<compile_context>
chip_gen: v7x
topology: tpu7x:2x2x1
jax: 0.10.0
libtpu: 0.0.40
codegen_flags: <defaults>
</compile_context>

<pallas_src>
import functools

import jax
import jax.numpy as jnp
from jax.experimental import pallas as pl
from jax.experimental.pallas import tpu as pltpu


def _round_up(n, m):
    return ((n + m - 1) // m) * m


def _cdiv(a, b):
    return (a + b - 1) // b


def _pipeline_mode_supported():
    try:
        pl.BlockSpec((8, 128), lambda i: (0, 0), pipeline_mode=pl.Buffered(1))
        return True
    except Exception:
        return False


_HAS_PIPELINE_MODE = _pipeline_mode_supported()


def _mlp_feat_kernel(x_ref, w1_ref, b1_ref, w2_ref, b2_ref, o_ref, *, n_hc, hc):
    """One (TM, Cin) row tile -> (TM, Cout).  The hidden dim is processed in
    n_hc static chunks of hc columns; fc2 partial products accumulate in f32."""
    x = x_ref[...]                                     # native dtype -> MXU
    acc = jnp.zeros((x_ref.shape[0], o_ref.shape[1]), dtype=jnp.float32)
    for c in range(n_hc):                              # static python loop
        lo, hi = c * hc, (c + 1) * hc
        h = jnp.dot(x, w1_ref[:, lo:hi], preferred_element_type=jnp.float32)
        h = jnp.maximum(h + b1_ref[:, lo:hi].astype(jnp.float32), 0.0)
        # TODO(synk): training-mode dropout would mask `h` using
        # pltpu.prng_random_bits; nn.Dropout is identity in eval mode.
        acc = acc + jnp.dot(h.astype(w2_ref.dtype), w2_ref[lo:hi, :],
                            preferred_element_type=jnp.float32)
    acc = acc + b2_ref[...].astype(jnp.float32)
    o_ref[...] = acc.astype(o_ref.dtype)


def mlp_feat(x, w1, b1, w2, b2, *, tm=512, x_buffers=2):
    """x: (..., in_features). w1: (in, hidden), b1: (hidden,),
    w2: (hidden, out), b2: (out,). Returns (..., out)."""
    lead = x.shape[:-1]
    Cin = x.shape[-1]
    H = w1.shape[1]
    Cout = w2.shape[1]
    M = 1
    for d in lead:
        M *= d

    x_isz = x.dtype.itemsize
    o_isz = x_isz
    w1_isz = w1.dtype.itemsize
    w2_isz = w2.dtype.itemsize
    b1_isz = b1.dtype.itemsize
    b2_isz = b2.dtype.itemsize

    LANE, SUB = 128, 8
    HC_MAX = 512                       # hidden chunk width when VMEM-constrained

    # ---- generation-aware VMEM budget -------------------------------------
    try:
        vmem_cap = int(pltpu.get_tpu_info().vmem_capacity_bytes)
    except Exception:
        vmem_cap = 64 << 20            # conservative fallback (v7x per-TC size)
    budget = (vmem_cap * 3) // 4       # headroom for internal scratch / DMA descs

    def weight_bytes(h_p):
        return (Cin * h_p * w1_isz + h_p * Cout * w2_isz
                + h_p * b1_isz + Cout * b2_isz)

    def n_weight_bufs(h_p):
        # single VMEM copy of the resident weights when it actually matters
        return 1 if (_HAS_PIPELINE_MODE and weight_bytes(h_p) >= (2 << 20)) else 2

    def vmem_need(tm_, h_p, hc_):
        return (x_buffers * tm_ * Cin * x_isz        # streamed x row tiles
                + 2 * tm_ * Cout * o_isz             # double-buffered out tiles
                + tm_ * hc_ * 4                      # live f32 hidden chunk
                + tm_ * Cout * 4                     # f32 result before store cast
                + n_weight_bufs(h_p) * weight_bytes(h_p))

    # ---- row tile: <= tm, multiple of 8, >= 2 tiles when M is large --------
    TM = min(tm, _round_up(M, SUB))
    if M > 2 * 256:                    # let v7x's two TensorCores both get work
        TM = min(TM, _round_up(_cdiv(M, 2), SUB))
    TM = max(SUB, _round_up(TM, SUB))

    # ---- hidden padding / in-kernel chunking --------------------------------
    H_p = _round_up(H, LANE)
    hc = H_p
    if vmem_need(TM, H_p, hc) > budget and H_p > HC_MAX:
        # chunk the hidden dim inside the kernel rather than shrinking TM
        hc = HC_MAX
        H_p = _round_up(H, HC_MAX)
    while TM > SUB and vmem_need(TM, H_p, hc) > budget:
        TM = max(SUB, _round_up(TM // 2, SUB))
    n_hc = H_p // hc
    n_tiles = _cdiv(M, TM)             # partial last block is masked by Pallas
    single_buf_w = n_weight_bufs(H_p) == 1

    # ---- exact zero-padding of the (tiny) weights only ----------------------
    x2d = x.reshape(M, Cin)            # free: collapses leading dims, no copy
    w1p = jnp.pad(w1, ((0, 0), (0, H_p - H)))
    b1p = jnp.pad(b1, (0, H_p - H)).reshape(1, H_p)
    w2p = jnp.pad(w2, ((0, H_p - H), (0, 0)))
    b2p = b2.reshape(1, Cout)

    vmem_limit = max(32 << 20, min(budget, vmem_cap - (8 << 20)))

    cost = pl.CostEstimate(
        flops=2 * M * (Cin * H_p + H_p * Cout),
        transcendentals=0,
        bytes_accessed=int(M * Cin * x_isz + M * Cout * o_isz
                           + Cin * H_p * w1_isz + H_p * Cout * w2_isz
                           + H_p * b1_isz + Cout * b2_isz),
    )

    def resident(shape):
        if single_buf_w:
            return pl.BlockSpec(shape, lambda i: (0, 0),
                                pipeline_mode=pl.Buffered(1))
        return pl.BlockSpec(shape, lambda i: (0, 0))

    x_spec_kwargs = {}
    if x_buffers != 2 and _HAS_PIPELINE_MODE:
        x_spec_kwargs["pipeline_mode"] = pl.Buffered(x_buffers)
    x_spec = pl.BlockSpec((TM, Cin), lambda i: (i, 0), **x_spec_kwargs)

    kernel = functools.partial(_mlp_feat_kernel, n_hc=n_hc, hc=hc)

    out = pl.pallas_call(
        kernel,
        out_shape=jax.ShapeDtypeStruct((M, Cout), x.dtype),
        grid_spec=pltpu.PrefetchScalarGridSpec(
            num_scalar_prefetch=0,
            grid=(n_tiles,),
            in_specs=[
                x_spec,                      # streamed x row tile
                resident((Cin, H_p)),        # W1 (resident)
                resident((1, H_p)),          # b1
                resident((H_p, Cout)),       # W2 (resident)
                resident((1, Cout)),         # b2
            ],
            out_specs=pl.BlockSpec((TM, Cout), lambda i: (i, 0)),
        ),
        compiler_params=pltpu.CompilerParams(
            dimension_semantics=("parallel",),
            vmem_limit_bytes=int(vmem_limit),
        ),
        cost_estimate=cost,
    )(x2d, w1p, b1p, w2p, b2p)

    return out.reshape(*lead, Cout)


def init_params(key, in_features, hidden_features, out_features, dtype=jnp.float32):
    """Deterministic init matching nn.Linear shapes (stored transposed:
    w1 is (in, hidden) == fc1.weight.T, etc.)."""
    k1, k2, k3, k4 = jax.random.split(key, 4)
    bound1 = 1.0 / jnp.sqrt(in_features)
    bound2 = 1.0 / jnp.sqrt(hidden_features)
    w1 = jax.random.uniform(k1, (in_features, hidden_features), dtype, -bound1, bound1)
    b1 = jax.random.uniform(k2, (hidden_features,), dtype, -bound1, bound1)
    w2 = jax.random.uniform(k3, (hidden_features, out_features), dtype, -bound2, bound2)
    b2 = jax.random.uniform(k4, (out_features,), dtype, -bound2, bound2)
    return w1, b1, w2, b2


if __name__ == "__main__":
    key = jax.random.PRNGKey(0)
    kx, kp = jax.random.split(key)

    # Small shapes consistent with the module: batch=2, seq=8, in_features=16,
    # hidden_features=32, out_features defaults to in_features.
    B, L, Cin, H = 2, 8, 16, 32
    Cout = Cin

    x = jax.random.normal(kx, (B, L, Cin), dtype=jnp.float32)
    w1, b1, w2, b2 = init_params(kp, Cin, H, Cout)

    y = mlp_feat(x, w1, b1, w2, b2)
    y = jax.block_until_ready(y)

    # Pure-JAX reference (dropout = identity in eval mode).
    h_ref = jnp.maximum(x.reshape(-1, Cin) @ w1 + b1, 0.0)
    y_ref = (h_ref @ w2 + b2).reshape(B, L, Cout)
    assert y.shape == y_ref.shape, "shape mismatch vs reference"
    # Both the in-kernel and the XLA-reference f32 matmuls run on the MXU at the
    # TPU default (reduced) precision, so compare with a matmul-level tolerance.
    assert jnp.allclose(y, y_ref, atol=2e-2, rtol=2e-2), "mismatch vs reference"

    print("KERNEL_OK")
</pallas_src>

<mosaic_0001>
module attributes {stable_mosaic.version = 11 : i64} {
  func.func @_mlp_feat_kernel(%arg0: i32, %arg1: memref<16x16xf32, #tpu.memory_space<vmem>>, %arg2: memref<16x128xf32, #tpu.memory_space<vmem>>, %arg3: memref<1x128xf32, #tpu.memory_space<vmem>>, %arg4: memref<128x16xf32, #tpu.memory_space<vmem>>, %arg5: memref<1x16xf32, #tpu.memory_space<vmem>>, %arg6: memref<16x16xf32, #tpu.memory_space<vmem>>) attributes {dimension_semantics = [#tpu.dimension_semantics<parallel>], iteration_bounds = array<i64: 1>, scalar_prefetch = 0 : i64, scratch_operands = 0 : i64, tpu.core_type = #tpu.core_type<tc>, window_params = [{transform_indices = @transform_0, window_bounds = array<i64: 16, 16>}, {pipeline_mode = #tpu.pipeline_mode<synchronous>, transform_indices = @transform_1, window_bounds = array<i64: 16, 128>}, {pipeline_mode = #tpu.pipeline_mode<synchronous>, transform_indices = @transform_2, window_bounds = array<i64: 1, 128>}, {pipeline_mode = #tpu.pipeline_mode<synchronous>, transform_indices = @transform_3, window_bounds = array<i64: 128, 16>}, {pipeline_mode = #tpu.pipeline_mode<synchronous>, transform_indices = @transform_4, window_bounds = array<i64: 1, 16>}, {transform_indices = @transform_5, window_bounds = array<i64: 16, 16>}]} {
    %c0 = arith.constant 0 : index
    %c0_0 = arith.constant 0 : index
    %0 = vector.load %arg1[%c0, %c0_0] : memref<16x16xf32, #tpu.memory_space<vmem>>, vector<16x16xf32>
    %cst = arith.constant 0.000000e+00 : f32
    %1 = vector.broadcast %cst : f32 to vector<16x16xf32>
    %c0_1 = arith.constant 0 : index
    %c0_2 = arith.constant 0 : index
    %2 = vector.load %arg2[%c0_1, %c0_2] : memref<16x128xf32, #tpu.memory_space<vmem>>, vector<16x128xf32>
    %cst_3 = arith.constant dense<0.000000e+00> : vector<16x128xf32>
    %3 = tpu.matmul %0, %2, %cst_3 {dimension_numbers = #tpu.dot_dimension_numbers<[1], [0], [0], [1], [0, 0, 1, 1], [], []>} : vector<16x16xf32>, vector<16x128xf32>, vector<16x128xf32> -> vector<16x128xf32>
    %c0_4 = arith.constant 0 : index
    %c0_5 = arith.constant 0 : index
    %4 = vector.load %arg3[%c0_4, %c0_5] : memref<1x128xf32, #tpu.memory_space<vmem>>, vector<1x128xf32>
    %5 = vector.broadcast %4 : vector<1x128xf32> to vector<16x128xf32>
    %6 = arith.addf %3, %5 : vector<16x128xf32>
    %cst_6 = arith.constant 0.000000e+00 : f32
    %7 = vector.broadcast %cst_6 : f32 to vector<16x128xf32>
    %8 = arith.maximumf %6, %7 : vector<16x128xf32>
    %c0_7 = arith.constant 0 : index
    %c0_8 = arith.constant 0 : index
    %9 = vector.load %arg4[%c0_7, %c0_8] : memref<128x16xf32, #tpu.memory_space<vmem>>, vector<128x16xf32>
    %cst_9 = arith.constant dense<0.000000e+00> : vector<16x16xf32>
    %10 = tpu.matmul %8, %9, %cst_9 {dimension_numbers = #tpu.dot_dimension_numbers<[1], [0], [0], [1], [0, 0, 1, 1], [], []>} : vector<16x128xf32>, vector<128x16xf32>, vector<16x16xf32> -> vector<16x16xf32>
    %11 = arith.addf %1, %10 : vector<16x16xf32>
    %c0_10 = arith.constant 0 : index
    %c0_11 = arith.constant 0 : index
    %12 = vector.load %arg5[%c0_10, %c0_11] : memref<1x16xf32, #tpu.memory_space<vmem>>, vector<1x16xf32>
    %13 = vector.broadcast %12 : vector<1x16xf32> to vector<16x16xf32>
    %14 = arith.addf %11, %13 : vector<16x16xf32>
    %c0_12 = arith.constant 0 : index
    %c0_13 = arith.constant 0 : index
    %15 = vector.load %arg6[%c0_12, %c0_13] : memref<16x16xf32, #tpu.memory_space<vmem>>, vector<16x16xf32>
    tpu.vector_store %arg6[%c0_12, %c0_13], %14 {strides = array<i32>} : memref<16x16xf32, #tpu.memory_space<vmem>>, vector<16x16xf32>,
    return
  }
  func.func @transform_0(%arg0: i32) -> (i32, i32) {
    %c0_i32 = arith.constant 0 : i32
    %c0_i32_0 = arith.constant 0 : i32
    return %arg0, %c0_i32 : i32, i32
  }
  func.func @transform_1(%arg0: i32) -> (i32, i32) {
    %c0_i32 = arith.constant 0 : i32
    %c0_i32_0 = arith.constant 0 : i32
    %c0_i32_1 = arith.constant 0 : i32
    return %c0_i32, %c0_i32_0 : i32, i32
  }
  func.func @transform_2(%arg0: i32) -> (i32, i32) {
    %c0_i32 = arith.constant 0 : i32
    %c0_i32_0 = arith.constant 0 : i32
    %c0_i32_1 = arith.constant 0 : i32
    return %c0_i32, %c0_i32_0 : i32, i32
  }
  func.func @transform_3(%arg0: i32) -> (i32, i32) {
    %c0_i32 = arith.constant 0 : i32
    %c0_i32_0 = arith.constant 0 : i32
    %c0_i32_1 = arith.constant 0 : i32
    return %c0_i32, %c0_i32_0 : i32, i32
  }
  func.func @transform_4(%arg0: i32) -> (i32, i32) {
    %c0_i32 = arith.constant 0 : i32
    %c0_i32_0 = arith.constant 0 : i32
    %c0_i32_1 = arith.constant 0 : i32
    return %c0_i32, %c0_i32_0 : i32, i32
  }
  func.func @transform_5(%arg0: i32) -> (i32, i32) {
    %c0_i32 = arith.constant 0 : i32
    %c0_i32_0 = arith.constant 0 : i32
    return %arg0, %c0_i32 : i32, i32
  }
}

</mosaic_0001>

<llo_original>
// kernel: tpu_custom_call.1
$region0: #{tpu_custom_call.1}
  #allocation0 [shape = 'u32[]', space=smem, size = 0x4, offset = 0x4, fixed_abs, tag = 'smem constant byte address 0x4 - core index']
  #allocation1 [shape = 'u32[144,128]{1,0:T(1,128)}', space=vmem, size = 0x12000, scoped, tag = 'internal scratch']
  %s0 = inlined_call_operand.vmem [shape: f32[16,16], index: 0, kind: input, shape index: {}]
  %s1 = inlined_call_operand.vmem [shape: f32[16,128], index: 1, kind: input, shape index: {}]
  %s2 = inlined_call_operand.vmem [shape: f32[1,128], index: 2, kind: input, shape index: {}]
  %s3 = inlined_call_operand.vmem [shape: f32[128,16], index: 3, kind: input, shape index: {}]
  %s4 = inlined_call_operand.vmem [shape: f32[1,16], index: 4, kind: input, shape index: {}]
  %s5 = inlined_call_operand.hbm [shape: f32[16,16], index: 5, kind: output, shape index: {}]
  %s6 = sld [smem:[#allocation0]]
  $region30: #{tpu_custom_call.1} parent=0
    _
  %s8 = ssub.s32 1, %s6
  %s9 = scalar_select 0, %s8, %s6
  $region1: #{tpu_custom_call.1} parent=0
    #allocation2 [shape = 'u8[8192]{0}', space=vmem, size = 0x2000, scoped, tag = 'output window, operand 0, single buffered']
    #allocation3 [shape = 's32[1]{0}', space=sflag, size = 0x4, scoped, tag = 'scoped memory for tpu_custom_call.1']
    %10 = vsyncpa [#allocation3], 0
    // Predicated region
    $region2: #{tpu_custom_call.1} parent=1 // pred_check
      _
    $region3: #{tpu_custom_call.1} parent=1 // pred_check_branch
      %12 = sbr.rel (0) target = $region5
    $region4: #{tpu_custom_call.1} parent=1 // pred_region
      _
    $region5: #{tpu_custom_call.1} parent=1 // pred_fallthru
      _
    // Predicated region
    $region6: #{tpu_custom_call.1} parent=1 // pred_check
      _
    $region7: #{tpu_custom_call.1} parent=1 // pred_check_branch
      %14 = sbr.rel (0) target = $region9
    $region8: #{tpu_custom_call.1} parent=1 // pred_region
      _
    $region9: #{tpu_custom_call.1} parent=1 // pred_fallthru
      _
    // Predicated region
    $region10: #{tpu_custom_call.1} parent=1 // pred_check
      _
    $region11: #{tpu_custom_call.1} parent=1 // pred_check_branch
      %16 = sbr.rel (0) target = $region13
    $region12: #{tpu_custom_call.1} parent=1 // pred_region
      _
    $region13: #{tpu_custom_call.1} parent=1 // pred_fallthru
      _
    // Predicated region
    $region14: #{tpu_custom_call.1} parent=1 // pred_check
      _
    $region15: #{tpu_custom_call.1} parent=1 // pred_check_branch
      %18 = sbr.rel (0) target = $region17
    $region16: #{tpu_custom_call.1} parent=1 // pred_region
      _
    $region17: #{tpu_custom_call.1} parent=1 // pred_fallthru
      _
    // Predicated region
    $region18: #{tpu_custom_call.1} parent=1 // pred_check
      _
    $region19: #{tpu_custom_call.1} parent=1 // pred_check_branch
      %20 = sbr.rel (0) target = $region21
    $region20: #{tpu_custom_call.1} parent=1 // pred_region
      _
    $region21: #{tpu_custom_call.1} parent=1 // pred_fallthru
      _
    %v21 = vld [vmem:[%s0] sm:$0xff]
    %v22 = vld [vmem:[%s0 + $0x8] sm:$0xff]
    %v23 = vld [vmem:[%s1] sm:$0xff]
    %v24 = vld [vmem:[%s1 + $0x8] sm:$0xff]
    %v25 = vld [vmem:[%s2] sm:$0x1]
    %v27 = vlaneseq
    %v28 = vshrl.u32 %v27, 7
    %v29 = vsub.s32 0, %v28
    %v30 = vrot.slane %v25, %v29
    %vm32 = vcmask 130048
    %v34 = vsel %vm32, %v21, 0
    %v37 = vsel %vm32, %v22, 0
    %39 = vmatprep.subr.mxu0 0.0
    %40 = vmatpush1.msra.mxu0 %v23
    %41 = vmatprep.subr.mxu0 0.0
    %42 = vmatpush1.msra.mxu0 %v24
    %43 = vmatprep.subr.mxu0 0.0
    %44 = vmatpush1.msra.mxu0 0.0
    %45 = vmatprep.subr.mxu0 0.0
    %46 = vmatpush1.msra.mxu0 0.0
    %47 = vmatprep.subr.mxu0 0.0
    %48 = vmatpush1.msra.mxu0 0.0
    %49 = vmatprep.subr.mxu0 0.0
    %50 = vmatpush1.msra.mxu0 0.0
    %51 = vmatprep.subr.mxu0 0.0
    %52 = vmatpush1.msra.mxu0 0.0
    %53 = vmatprep.subr.mxu0 0.0
    %54 = vmatpush1.msra.mxu0 0.0
    %55 = vmatprep.subr.mxu0 0.0
    %56 = vmatpush1.msra.mxu0 0.0
    %57 = vmatprep.subr.mxu0 0.0
    %58 = vmatpush1.msra.mxu0 0.0
    %59 = vmatprep.subr.mxu0 0.0
    %60 = vmatpush1.msra.mxu0 0.0
    %61 = vmatprep.subr.mxu0 0.0
    %62 = vmatpush1.msra.mxu0 0.0
    %63 = vmatprep.subr.mxu0 0.0
    %64 = vmatpush1.msra.mxu0 0.0
    %65 = vmatprep.subr.mxu0 0.0
    %66 = vmatpush1.msra.mxu0 0.0
    %67 = vmatprep.subr.mxu0 0.0
    %68 = vmatpush1.msra.mxu0 0.0
    %69 = vmatprep.subr.mxu0 0.0
    %70 = vmatpush1.msra.mxu0 0.0
    %71 = vmatprep.subr.mxu0 0.0
    %72 = vmatpush1.msra.mxu0 0.0
    %73 = vmatprep.subr.mxu0 0.0
    %74 = vmatpush1.msra.mxu0 0.0
    %75 = vmatprep.subr.mxu0 0.0
    %76 = vmatpush1.msra.mxu0 0.0
    %77 = vmatprep.subr.mxu0 0.0
    %78 = vmatpush1.msra.mxu0 0.0
    %79 = vmatprep.subr.mxu0 0.0
    %80 = vmatpush1.msra.mxu0 0.0
    %81 = vmatprep.subr.mxu0 0.0
    %82 = vmatpush1.msra.mxu0 0.0
    %83 = vmatprep.subr.mxu0 0.0
    %84 = vmatpush1.msra.mxu0 0.0
    %85 = vmatprep.subr.mxu0 0.0
    %86 = vmatpush1.msra.mxu0 0.0
    %87 = vmatprep.subr.mxu0 0.0
    %88 = vmatpush1.msra.mxu0 0.0
    %89 = vmatprep.subr.mxu0 0.0
    %90 = vmatpush1.msra.mxu0 0.0
    %91 = vmatprep.subr.mxu0 0.0
    %92 = vmatpush1.msra.mxu0 0.0
    %93 = vmatprep.subr.mxu0 0.0
    %94 = vmatpush1.msra.mxu0 0.0
    %95 = vmatprep.subr.mxu0 0.0
    %96 = vmatpush1.msra.mxu0 0.0
    %97 = vmatprep.subr.mxu0 0.0
    %98 = vmatpush1.msra.mxu0 0.0
    %99 = vmatprep.subr.mxu0 0.0
    %100 = vmatpush1.msra.mxu0 0.0
    %101 = vmatprep.subr.mxu0 0.0
    %102 = vmatpush1.msra.mxu0 0.0
    %103 = vmatprep.mubr.f32.mxu0 0.0
    %104 = vmatmul.mubr.f32.gmra.mrb[0].mxu0 %v34
    %v105 = vpop.f32.mrb[0].mxu0
    %v106 = vadd.f32 %v30, %v105
    %v107 = vpop.f32.mrb[0].mxu0
    %108 = vmatprep.mubr.f32.mxu0 0.0
    %109 = vmatmul.mubr.f32.gmra.mrb[0].mxu0 %v37
    %v110 = vpop.f32.mrb[0].mxu0
    %v111 = vadd.f32 %v30, %v110
    %v112 = vpop.f32.mrb[0].mxu0
    %113 = vdwg.mxu0
    %v114 = vmax.f32 %v106, 0.0
    %v115 = vmax.f32 %v111, 0.0
    %v116 = vld [vmem:[%s3] sm:$0xff]
    %v117 = vld [vmem:[%s3 + $0x8] sm:$0xff]
    %v118 = vld [vmem:[%s3 + $0x10] sm:$0xff]
    %v119 = vld [vmem:[%s3 + $0x18] sm:$0xff]
    %v120 = vld [vmem:[%s3 + $0x20] sm:$0xff]
    %v121 = vld [vmem:[%s3 + $0x28] sm:$0xff]
    %v122 = vld [vmem:[%s3 + $0x30] sm:$0xff]
    %v123 = vld [vmem:[%s3 + $0x38] sm:$0xff]
    %v124 = vld [vmem:[%s3 + $0x40] sm:$0xff]
    %v125 = vld [vmem:[%s3 + $0x48] sm:$0xff]
    %v126 = vld [vmem:[%s3 + $0x50] sm:$0xff]
    %v127 = vld [vmem:[%s3 + $0x58] sm:$0xff]
    %v128 = vld [vmem:[%s3 + $0x60] sm:$0xff]
    %v129 = vld [vmem:[%s3 + $0x68] sm:$0xff]
    %v130 = vld [vmem:[%s3 + $0x70] sm:$0xff]
    %v131 = vld [vmem:[%s3 + $0x78] sm:$0xff]
    %v132 = vld [vmem:[%s4] sm:$0x1]
    %v134 = vlaneseq
    %v135 = vshrl.u32 %v134, 7
    %v136 = vsub.s32 0, %v135
    %v137 = vrot.slane %v132, %v136
    %139 = vmatprep.subr.mxu0 0.0
    %140 = vmatpush1.msra.mxu0 %v116
    %141 = vmatprep.subr.mxu0 0.0
    %142 = vmatpush1.msra.mxu0 %v117
    %143 = vmatprep.subr.mxu0 0.0
    %144 = vmatpush1.msra.mxu0 %v118
    %145 = vmatprep.subr.mxu0 0.0
    %146 = vmatpush1.msra.mxu0 %v119
    %147 = vmatprep.subr.mxu0 0.0
    %148 = vmatpush1.msra.mxu0 %v120
    %149 = vmatprep.subr.mxu0 0.0
    %150 = vmatpush1.msra.mxu0 %v121
    %151 = vmatprep.subr.mxu0 0.0
    %152 = vmatpush1.msra.mxu0 %v122
    %153 = vmatprep.subr.mxu0 0.0
    %154 = vmatpush1.msra.mxu0 %v123
    %155 = vmatprep.subr.mxu0 0.0
    %156 = vmatpush1.msra.mxu0 %v124
    %157 = vmatprep.subr.mxu0 0.0
    %158 = vmatpush1.msra.mxu0 %v125
    %159 = vmatprep.subr.mxu0 0.0
    %160 = vmatpush1.msra.mxu0 %v126
    %161 = vmatprep.subr.mxu0 0.0
    %162 = vmatpush1.msra.mxu0 %v127
    %163 = vmatprep.subr.mxu0 0.0
    %164 = vmatpush1.msra.mxu0 %v128
    %165 = vmatprep.subr.mxu0 0.0
    %166 = vmatpush1.msra.mxu0 %v129
    %167 = vmatprep.subr.mxu0 0.0
    %168 = vmatpush1.msra.mxu0 %v130
    %169 = vmatprep.subr.mxu0 0.0
    %170 = vmatpush1.msra.mxu0 %v131
    %171 = vmatprep.subr.mxu0 0.0
    %172 = vmatpush1.msra.mxu0 0.0
    %173 = vmatprep.subr.mxu0 0.0
    %174 = vmatpush1.msra.mxu0 0.0
    %175 = vmatprep.subr.mxu0 0.0
    %176 = vmatpush1.msra.mxu0 0.0
    %177 = vmatprep.subr.mxu0 0.0
    %178 = vmatpush1.msra.mxu0 0.0
    %179 = vmatprep.subr.mxu0 0.0
    %180 = vmatpush1.msra.mxu0 0.0
    %181 = vmatprep.subr.mxu0 0.0
    %182 = vmatpush1.msra.mxu0 0.0
    %183 = vmatprep.subr.mxu0 0.0
    %184 = vmatpush1.msra.mxu0 0.0
    %185 = vmatprep.subr.mxu0 0.0
    %186 = vmatpush1.msra.mxu0 0.0
    %187 = vmatprep.subr.mxu0 0.0
    %188 = vmatpush1.msra.mxu0 0.0
    %189 = vmatprep.subr.mxu0 0.0
    %190 = vmatpush1.msra.mxu0 0.0
    %191 = vmatprep.subr.mxu0 0.0
    %192 = vmatpush1.msra.mxu0 0.0
    %193 = vmatprep.subr.mxu0 0.0
    %194 = vmatpush1.msra.mxu0 0.0
    %195 = vmatprep.subr.mxu0 0.0
    %196 = vmatpush1.msra.mxu0 0.0
    %197 = vmatprep.subr.mxu0 0.0
    %198 = vmatpush1.msra.mxu0 0.0
    %199 = vmatprep.subr.mxu0 0.0
    %200 = vmatpush1.msra.mxu0 0.0
    %201 = vmatprep.subr.mxu0 0.0
    %202 = vmatpush1.msra.mxu0 0.0
    %203 = vmatprep.mubr.f32.mxu0 0.0
    %204 = vmatmul.mubr.f32.gmra.mrb[0].mxu0 %v114
    %v205 = vpop.f32.mrb[0].mxu0
    %v206 = vadd.f32 %v137, %v205
    %v207 = vpop.f32.mrb[0].mxu0
    %208 = vmatprep.mubr.f32.mxu0 0.0
    %209 = vmatmul.mubr.f32.gmra.mrb[0].mxu0 %v115
    %v210 = vpop.f32.mrb[0].mxu0
    %v211 = vadd.f32 %v137, %v210
    %v212 = vpop.f32.mrb[0].mxu0
    %213 = vdwg.mxu0
    %214 = vst.msk [vmem:[#allocation2] sm:$0xff] %vm32, %v206
    %215 = vst.msk [vmem:[#allocation2 + $0x8] sm:$0xff] %vm32, %v211
    // Predicated region
    $region22: #{tpu_custom_call.1} parent=1 // pred_check
      _
    $region23: #{tpu_custom_call.1} parent=1 // pred_check_branch
      %217 = sbr.rel (0) target = $region25
    $region24: #{tpu_custom_call.1} parent=1 // pred_region
      %s219 = ssub.s32 256, 256
      %220 = vsyncadd [#allocation3], %s219
      %s221 = sshll.u32 [#allocation2], 4
      %s222 = int_to_ptr.vmem [resolvable:$true] %s221
      %227 = dma.vmem_to_hbm [thread:$0]  %s222, 256, %s5, [#allocation3], 128, 128, 8
    $region25: #{tpu_custom_call.1} parent=1 // pred_fallthru
      _
    // Predicated region
    $region26: #{tpu_custom_call.1} parent=1 // pred_check
      _
    $region27: #{tpu_custom_call.1} parent=1 // pred_check_branch
      %229 = sbr.rel (0) target = $region29
    $region28: #{tpu_custom_call.1} parent=1 // pred_region
      %230 = dma.done [#allocation3], 256
    $region29: #{tpu_custom_call.1} parent=1 // pred_fallthru
      _
    %231 = vsyncpa [#allocation3], 1

</llo_original>
